<compile_context>
chip_gen: v5e
topology: v5e:2x2
jax: 0.10.0
libtpu: 0.0.40
codegen_flags: <defaults>
</compile_context>

<pallas_src>
import jax
import jax.numpy as jnp
from jax.experimental import pallas as pl
from jax.experimental.pallas import tpu as pltpu

LAT_PAD = 128  # latent lane-slab width (one full vreg lane group)


# --------------------------------------------------------------------------- #
# Pallas kernel: full VAE forward on one batch tile (weights resident in VMEM)
# --------------------------------------------------------------------------- #
def vae_kernel(x_ref, eps_ref,
               w1_ref, b1_ref, w2_ref, b2_ref,
               whead_ref, bhead_ref,
               wd1_ref, bd1_ref, wd2_ref, bd2_ref, wd3_ref, bd3_ref,
               xhat_ref, lat_ref):
    # ---- encoder layer 1: f32 x @ f32 w1 (full precision on the big K) ----
    h = jnp.dot(x_ref[...], w1_ref[...], preferred_element_type=jnp.float32)
    h = jnp.maximum(h + b1_ref[...], 0.0)

    # ---- encoder layer 2: bf16 operands, f32 accumulation ----
    h = jnp.dot(h.astype(jnp.bfloat16), w2_ref[...],
                preferred_element_type=jnp.float32)
    h = jnp.maximum(h + b2_ref[...], 0.0)

    # ---- fused mu/logvar head: (TM,64) @ (64, 3*LAT_PAD) ----
    # column layout (L = latent):
    #   [0:L]                       -> mu            (slab0 lanes [0:L])
    #   [L:2L]                      -> logvar        (slab0 lanes [L:2L])
    #   [LAT_PAD+2L : LAT_PAD+3L]   -> mu   copy     (slab1 lanes [2L:3L])
    #   [2*LAT_PAD+2L : 2*LAT_PAD+3L]-> logvar copy  (slab2 lanes [2L:3L])
    ml = jnp.dot(h.astype(jnp.bfloat16), whead_ref[...],
                 preferred_element_type=jnp.float32) + bhead_ref[...]
    mulv = ml[:, :LAT_PAD]                 # mu | logvar | zeros
    mu_z = ml[:, LAT_PAD:2 * LAT_PAD]      # mu at z-lanes, zeros elsewhere
    lv_z = ml[:, 2 * LAT_PAD:]             # logvar at z-lanes, zeros elsewhere

    # ---- reparameterization, already in the z-lane position ----
    # outside [2L:3L]: mu_z = 0, eps = 0, exp(0) = 1  ->  exactly 0
    z = mu_z + eps_ref[...] * jnp.exp(0.5 * lv_z)

    # packed lat output: lanes [0:L]=mu, [L:2L]=logvar, [2L:3L]=z, rest 0
    lat_ref[...] = mulv + z

    # ---- decoder (bf16 operands, f32 accumulation) ----
    # wd1 is zero-padded so only the z-lanes [2L:3L] contribute.
    d = jnp.dot(z.astype(jnp.bfloat16), wd1_ref[...],
                preferred_element_type=jnp.float32)
    d = jnp.maximum(d + bd1_ref[...], 0.0)
    d = jnp.dot(d.astype(jnp.bfloat16), wd2_ref[...],
                preferred_element_type=jnp.float32)
    d = jnp.maximum(d + bd2_ref[...], 0.0)
    xhat_ref[...] = jnp.dot(d.astype(jnp.bfloat16), wd3_ref[...],
                            preferred_element_type=jnp.float32) + bd3_ref[...]


# --------------------------------------------------------------------------- #
# Wrapper
# --------------------------------------------------------------------------- #
def _round_up(n, m):
    return ((n + m - 1) // m) * m


def _pick_tm(B, cap=512):
    """Sublane-friendly batch tile that divides B exactly whenever possible."""
    if B <= cap:
        if B >= 128 and B % 16 == 0:
            return B // 2            # >= 2 parallel tiles -> both TCs on v7x
        return B                     # single full-batch tile, no padding
    for tm in range(cap, 0, -8):     # largest multiple-of-8 divisor <= cap
        if B % tm == 0:
            return tm
    n_tiles = -(-B // cap)           # ragged fallback: pad < 8 rows per tile
    return _round_up(-(-B // n_tiles), 8)


def _row_spec(tm, cols):
    return pl.BlockSpec((tm, cols), lambda i: (i, 0))


def _resident_spec(shape):
    # constant index_map -> fetched once, stays resident in VMEM across steps
    return pl.BlockSpec(shape, lambda i: (0, 0))


def vae_forward_pallas(x, params, eps):
    """Returns (x, x_hat, mu, logvar, z) exactly like the PyTorch module."""
    input_size = params["w1"].shape[0]
    hidden = params["w1"].shape[1]
    latent = params["wmu"].shape[1]
    L = latent

    x2d = x.reshape(-1, input_size).astype(jnp.float32)
    B = x2d.shape[0]

    TM = _pick_tm(B)
    B_pad = _round_up(B, TM)
    grid = (B_pad // TM,)

    # Inputs: x stays f32 (cast-free path, first matmul in f32). Pad only if
    # the tile does not divide B (rare; _pick_tm avoids it when possible).
    if B_pad == B:
        x_in = x2d
    else:
        x_in = jnp.zeros((B_pad, input_size), jnp.float32).at[:B].set(x2d)
    eps_in = jnp.zeros((B_pad, LAT_PAD), jnp.float32).at[:B, 2 * L:3 * L].set(
        eps.astype(jnp.float32))

    # Fused head weight/bias: mu | logvar | mu-copy(z-lanes) | logvar-copy(z-lanes)
    whead = jnp.zeros((hidden, 3 * LAT_PAD), jnp.float32)
    whead = whead.at[:, 0:L].set(params["wmu"])
    whead = whead.at[:, L:2 * L].set(params["wlv"])
    whead = whead.at[:, LAT_PAD + 2 * L:LAT_PAD + 3 * L].set(params["wmu"])
    whead = whead.at[:, 2 * LAT_PAD + 2 * L:2 * LAT_PAD + 3 * L].set(params["wlv"])
    bhead = jnp.zeros((1, 3 * LAT_PAD), jnp.float32)
    bhead = bhead.at[:, 0:L].set(params["bmu"])
    bhead = bhead.at[:, L:2 * L].set(params["blv"])
    bhead = bhead.at[:, LAT_PAD + 2 * L:LAT_PAD + 3 * L].set(params["bmu"])
    bhead = bhead.at[:, 2 * LAT_PAD + 2 * L:2 * LAT_PAD + 3 * L].set(params["blv"])

    # Decoder-1 weight padded along the z-lane contraction dim (rows 2L:3L).
    wd1 = jnp.zeros((LAT_PAD, hidden), jnp.float32).at[2 * L:3 * L].set(params["wd1"])

    bf = lambda a: a.astype(jnp.bfloat16)
    f32 = lambda a: a.astype(jnp.float32)

    inputs = (
        x_in, eps_in,
        f32(params["w1"]), f32(params["b1"]),      # layer 1 kept f32
        bf(params["w2"]), f32(params["b2"]),
        bf(whead), bhead,
        bf(wd1), f32(params["bd1"]),
        bf(params["wd2"]), f32(params["bd2"]),
        bf(params["wd3"]), f32(params["bd3"]),
    )

    in_specs = [
        _row_spec(TM, input_size),     # x tile
        _row_spec(TM, LAT_PAD),        # eps tile
    ] + [_resident_spec(a.shape) for a in inputs[2:]]

    out_shape = (
        jax.ShapeDtypeStruct((B_pad, input_size), jnp.float32),   # x_hat
        jax.ShapeDtypeStruct((B_pad, LAT_PAD), jnp.float32),      # mu|logvar|z
    )
    out_specs = (
        _row_spec(TM, input_size),
        _row_spec(TM, LAT_PAD),
    )

    x_hat_p, lat_p = pl.pallas_call(
        vae_kernel,
        grid=grid,
        in_specs=in_specs,
        out_specs=out_specs,
        out_shape=out_shape,
        compiler_params=pltpu.CompilerParams(
            dimension_semantics=("parallel",),      # megacore-shard batch tiles
            vmem_limit_bytes=48 * 1024 * 1024),     # room for 512-row tiles
    )(*inputs)

    x_hat = x_hat_p if B_pad == B else x_hat_p[:B]
    mu = lat_p[:B, 0:L]
    logvar = lat_p[:B, L:2 * L]
    z = lat_p[:B, 2 * L:3 * L]
    return x2d, x_hat, mu, logvar, z


# --------------------------------------------------------------------------- #
# Deterministic parameter init (matches nn.Linear's U(-1/sqrt(fan_in), ...))
# --------------------------------------------------------------------------- #
def init_linear(key, fan_in, fan_out):
    kw, kb = jax.random.split(key)
    bound = 1.0 / float(fan_in) ** 0.5
    w = jax.random.uniform(kw, (fan_in, fan_out), jnp.float32, -bound, bound)
    b = jax.random.uniform(kb, (1, fan_out), jnp.float32, -bound, bound)
    return w, b


def init_vae_params(key, input_size, hidden_size=64, latent_size=6):
    keys = jax.random.split(key, 7)
    p = {}
    p["w1"], p["b1"] = init_linear(keys[0], input_size, hidden_size)
    p["w2"], p["b2"] = init_linear(keys[1], hidden_size, hidden_size)
    p["wmu"], p["bmu"] = init_linear(keys[2], hidden_size, latent_size)
    p["wlv"], p["blv"] = init_linear(keys[3], hidden_size, latent_size)
    p["wd1"], p["bd1"] = init_linear(keys[4], latent_size, hidden_size)
    p["wd2"], p["bd2"] = init_linear(keys[5], hidden_size, hidden_size)
    p["wd3"], p["bd3"] = init_linear(keys[6], hidden_size, input_size)
    return p


# --------------------------------------------------------------------------- #
# Pure-JAX f32 reference for verification
# --------------------------------------------------------------------------- #
def vae_forward_ref(x, params, eps):
    input_size = params["w1"].shape[0]
    x2d = x.reshape(-1, input_size).astype(jnp.float32)
    h = jnp.maximum(x2d @ params["w1"] + params["b1"], 0.0)
    h = jnp.maximum(h @ params["w2"] + params["b2"], 0.0)
    mu = h @ params["wmu"] + params["bmu"]
    logvar = h @ params["wlv"] + params["blv"]
    z = mu + eps * jnp.exp(0.5 * logvar)
    d = jnp.maximum(z @ params["wd1"] + params["bd1"], 0.0)
    d = jnp.maximum(d @ params["wd2"] + params["bd2"], 0.0)
    x_hat = d @ params["wd3"] + params["bd3"]
    return x2d, x_hat, mu, logvar, z


if __name__ == "__main__":
    key = jax.random.PRNGKey(0)
    k_x, k_eps, k_params = jax.random.split(key, 3)

    # Small NCHW-like input, flattened to (-1, input_size) as in the module.
    B, C, Hs, Ws = 2, 4, 16, 16
    input_size = C * Hs * Ws          # 1024
    hidden_size, latent_size = 64, 6

    x = jax.random.normal(k_x, (B, C, Hs, Ws), jnp.float32)
    # torch.empty_like(sigma).normal_() -> deterministic stand-in drawn here.
    eps = jax.random.normal(k_eps, (B, latent_size), jnp.float32)

    params = init_vae_params(k_params, input_size, hidden_size, latent_size)

    outs = vae_forward_pallas(x, params, eps)
    outs = jax.block_until_ready(outs)

    refs = vae_forward_ref(x, params, eps)
    # Layer 1 is exact f32; remaining layers use bf16 MXU operands with f32
    # accumulation -> loosened tolerance vs the pure-f32 reference.
    for o, r in zip(outs, refs):
        assert o.shape == r.shape and o.dtype == r.dtype
        assert jnp.allclose(o, r, atol=2e-2, rtol=2e-2), "mismatch vs reference"

    print("KERNEL_OK")
</pallas_src>

<mosaic_0001>
module attributes {stable_mosaic.version = 11 : i64} {
  func.func @vae_kernel(%arg0: i32, %arg1: memref<2x1024xf32, #tpu.memory_space<vmem>>, %arg2: memref<2x128xf32, #tpu.memory_space<vmem>>, %arg3: memref<1024x64xf32, #tpu.memory_space<vmem>>, %arg4: memref<1x64xf32, #tpu.memory_space<vmem>>, %arg5: memref<64x64xbf16, #tpu.memory_space<vmem>>, %arg6: memref<1x64xf32, #tpu.memory_space<vmem>>, %arg7: memref<64x384xbf16, #tpu.memory_space<vmem>>, %arg8: memref<1x384xf32, #tpu.memory_space<vmem>>, %arg9: memref<128x64xbf16, #tpu.memory_space<vmem>>, %arg10: memref<1x64xf32, #tpu.memory_space<vmem>>, %arg11: memref<64x64xbf16, #tpu.memory_space<vmem>>, %arg12: memref<1x64xf32, #tpu.memory_space<vmem>>, %arg13: memref<64x1024xbf16, #tpu.memory_space<vmem>>, %arg14: memref<1x1024xf32, #tpu.memory_space<vmem>>, %arg15: memref<2x1024xf32, #tpu.memory_space<vmem>>, %arg16: memref<2x128xf32, #tpu.memory_space<vmem>>) attributes {dimension_semantics = [#tpu.dimension_semantics<parallel>], iteration_bounds = array<i64: 1>, scalar_prefetch = 0 : i64, scratch_operands = 0 : i64, tpu.core_type = #tpu.core_type<tc>, window_params = [{transform_indices = @transform_0, window_bounds = array<i64: 2, 1024>}, {transform_indices = @transform_1, window_bounds = array<i64: 2, 128>}, {pipeline_mode = #tpu.pipeline_mode<synchronous>, transform_indices = @transform_2, window_bounds = array<i64: 1024, 64>}, {pipeline_mode = #tpu.pipeline_mode<synchronous>, transform_indices = @transform_3, window_bounds = array<i64: 1, 64>}, {pipeline_mode = #tpu.pipeline_mode<synchronous>, transform_indices = @transform_4, window_bounds = array<i64: 64, 64>}, {pipeline_mode = #tpu.pipeline_mode<synchronous>, transform_indices = @transform_5, window_bounds = array<i64: 1, 64>}, {pipeline_mode = #tpu.pipeline_mode<synchronous>, transform_indices = @transform_6, window_bounds = array<i64: 64, 384>}, {pipeline_mode = #tpu.pipeline_mode<synchronous>, transform_indices = @transform_7, window_bounds = array<i64: 1, 384>}, {pipeline_mode = #tpu.pipeline_mode<synchronous>, transform_indices = @transform_8, window_bounds = array<i64: 128, 64>}, {pipeline_mode = #tpu.pipeline_mode<synchronous>, transform_indices = @transform_9, window_bounds = array<i64: 1, 64>}, {pipeline_mode = #tpu.pipeline_mode<synchronous>, transform_indices = @transform_10, window_bounds = array<i64: 64, 64>}, {pipeline_mode = #tpu.pipeline_mode<synchronous>, transform_indices = @transform_11, window_bounds = array<i64: 1, 64>}, {pipeline_mode = #tpu.pipeline_mode<synchronous>, transform_indices = @transform_12, window_bounds = array<i64: 64, 1024>}, {pipeline_mode = #tpu.pipeline_mode<synchronous>, transform_indices = @transform_13, window_bounds = array<i64: 1, 1024>}, {transform_indices = @transform_14, window_bounds = array<i64: 2, 1024>}, {transform_indices = @transform_15, window_bounds = array<i64: 2, 128>}]} {
    %c0 = arith.constant 0 : index
    %c0_0 = arith.constant 0 : index
    %0 = vector.load %arg1[%c0, %c0_0] : memref<2x1024xf32, #tpu.memory_space<vmem>>, vector<2x1024xf32>
    %c0_1 = arith.constant 0 : index
    %c0_2 = arith.constant 0 : index
    %1 = vector.load %arg3[%c0_1, %c0_2] : memref<1024x64xf32, #tpu.memory_space<vmem>>, vector<1024x64xf32>
    %cst = arith.constant dense<0.000000e+00> : vector<2x64xf32>
    %2 = tpu.matmul %0, %1, %cst {dimension_numbers = #tpu.dot_dimension_numbers<[1], [0], [0], [1], [0, 0, 1, 1], [], []>} : vector<2x1024xf32>, vector<1024x64xf32>, vector<2x64xf32> -> vector<2x64xf32>
    %c0_3 = arith.constant 0 : index
    %c0_4 = arith.constant 0 : index
    %3 = vector.load %arg4[%c0_3, %c0_4] : memref<1x64xf32, #tpu.memory_space<vmem>>, vector<1x64xf32>
    %4 = vector.broadcast %3 : vector<1x64xf32> to vector<2x64xf32>
    %5 = arith.addf %2, %4 : vector<2x64xf32>
    %cst_5 = arith.constant 0.000000e+00 : f32
    %6 = vector.broadcast %cst_5 : f32 to vector<2x64xf32>
    %7 = arith.maximumf %5, %6 : vector<2x64xf32>
    %8 = arith.truncf %7 : vector<2x64xf32> to vector<2x64xbf16>
    %c0_6 = arith.constant 0 : index
    %c0_7 = arith.constant 0 : index
    %9 = vector.load %arg5[%c0_6, %c0_7] : memref<64x64xbf16, #tpu.memory_space<vmem>>, vector<64x64xbf16>
    %cst_8 = arith.constant dense<0.000000e+00> : vector<2x64xf32>
    %10 = tpu.matmul %8, %9, %cst_8 {dimension_numbers = #tpu.dot_dimension_numbers<[1], [0], [0], [1], [0, 0, 1, 1], [], []>} : vector<2x64xbf16>, vector<64x64xbf16>, vector<2x64xf32> -> vector<2x64xf32>
    %c0_9 = arith.constant 0 : index
    %c0_10 = arith.constant 0 : index
    %11 = vector.load %arg6[%c0_9, %c0_10] : memref<1x64xf32, #tpu.memory_space<vmem>>, vector<1x64xf32>
    %12 = vector.broadcast %11 : vector<1x64xf32> to vector<2x64xf32>
    %13 = arith.addf %10, %12 : vector<2x64xf32>
    %cst_11 = arith.constant 0.000000e+00 : f32
    %14 = vector.broadcast %cst_11 : f32 to vector<2x64xf32>
    %15 = arith.maximumf %13, %14 : vector<2x64xf32>
    %16 = arith.truncf %15 : vector<2x64xf32> to vector<2x64xbf16>
    %c0_12 = arith.constant 0 : index
    %c0_13 = arith.constant 0 : index
    %17 = vector.load %arg7[%c0_12, %c0_13] : memref<64x384xbf16, #tpu.memory_space<vmem>>, vector<64x384xbf16>
    %cst_14 = arith.constant dense<0.000000e+00> : vector<2x384xf32>
    %18 = tpu.matmul %16, %17, %cst_14 {dimension_numbers = #tpu.dot_dimension_numbers<[1], [0], [0], [1], [0, 0, 1, 1], [], []>} : vector<2x64xbf16>, vector<64x384xbf16>, vector<2x384xf32> -> vector<2x384xf32>
    %c0_15 = arith.constant 0 : index
    %c0_16 = arith.constant 0 : index
    %19 = vector.load %arg8[%c0_15, %c0_16] : memref<1x384xf32, #tpu.memory_space<vmem>>, vector<1x384xf32>
    %20 = vector.broadcast %19 : vector<1x384xf32> to vector<2x384xf32>
    %21 = arith.addf %18, %20 : vector<2x384xf32>
    %22 = vector.extract_strided_slice %21 {offsets = [0, 0], sizes = [2, 128], strides = [1, 1]} : vector<2x384xf32> to vector<2x128xf32>
    %23 = vector.extract_strided_slice %21 {offsets = [0, 128], sizes = [2, 128], strides = [1, 1]} : vector<2x384xf32> to vector<2x128xf32>
    %24 = vector.extract_strided_slice %21 {offsets = [0, 256], sizes = [2, 128], strides = [1, 1]} : vector<2x384xf32> to vector<2x128xf32>
    %c0_17 = arith.constant 0 : index
    %c0_18 = arith.constant 0 : index
    %25 = vector.load %arg2[%c0_17, %c0_18] : memref<2x128xf32, #tpu.memory_space<vmem>>, vector<2x128xf32>
    %cst_19 = arith.constant 5.000000e-01 : f32
    %26 = vector.broadcast %cst_19 : f32 to vector<2x128xf32>
    %27 = arith.mulf %26, %24 : vector<2x128xf32>
    %28 = math.exp %27 : vector<2x128xf32>
    %29 = arith.mulf %25, %28 : vector<2x128xf32>
    %30 = arith.addf %23, %29 : vector<2x128xf32>
    %31 = arith.addf %22, %30 : vector<2x128xf32>
    %c0_20 = arith.constant 0 : index
    %c0_21 = arith.constant 0 : index
    %32 = vector.load %arg16[%c0_20, %c0_21] : memref<2x128xf32, #tpu.memory_space<vmem>>, vector<2x128xf32>
    tpu.vector_store %arg16[%c0_20, %c0_21], %31 {strides = array<i32>} : memref<2x128xf32, #tpu.memory_space<vmem>>, vector<2x128xf32>,
    %33 = arith.truncf %30 : vector<2x128xf32> to vector<2x128xbf16>
    %c0_22 = arith.constant 0 : index
    %c0_23 = arith.constant 0 : index
    %34 = vector.load %arg9[%c0_22, %c0_23] : memref<128x64xbf16, #tpu.memory_space<vmem>>, vector<128x64xbf16>
    %cst_24 = arith.constant dense<0.000000e+00> : vector<2x64xf32>
    %35 = tpu.matmul %33, %34, %cst_24 {dimension_numbers = #tpu.dot_dimension_numbers<[1], [0], [0], [1], [0, 0, 1, 1], [], []>} : vector<2x128xbf16>, vector<128x64xbf16>, vector<2x64xf32> -> vector<2x64xf32>
    %c0_25 = arith.constant 0 : index
    %c0_26 = arith.constant 0 : index
    %36 = vector.load %arg10[%c0_25, %c0_26] : memref<1x64xf32, #tpu.memory_space<vmem>>, vector<1x64xf32>
    %37 = vector.broadcast %36 : vector<1x64xf32> to vector<2x64xf32>
    %38 = arith.addf %35, %37 : vector<2x64xf32>
    %cst_27 = arith.constant 0.000000e+00 : f32
    %39 = vector.broadcast %cst_27 : f32 to vector<2x64xf32>
    %40 = arith.maximumf %38, %39 : vector<2x64xf32>
    %41 = arith.truncf %40 : vector<2x64xf32> to vector<2x64xbf16>
    %c0_28 = arith.constant 0 : index
    %c0_29 = arith.constant 0 : index
    %42 = vector.load %arg11[%c0_28, %c0_29] : memref<64x64xbf16, #tpu.memory_space<vmem>>, vector<64x64xbf16>
    %cst_30 = arith.constant dense<0.000000e+00> : vector<2x64xf32>
    %43 = tpu.matmul %41, %42, %cst_30 {dimension_numbers = #tpu.dot_dimension_numbers<[1], [0], [0], [1], [0, 0, 1, 1], [], []>} : vector<2x64xbf16>, vector<64x64xbf16>, vector<2x64xf32> -> vector<2x64xf32>
    %c0_31 = arith.constant 0 : index
    %c0_32 = arith.constant 0 : index
    %44 = vector.load %arg12[%c0_31, %c0_32] : memref<1x64xf32, #tpu.memory_space<vmem>>, vector<1x64xf32>
    %45 = vector.broadcast %44 : vector<1x64xf32> to vector<2x64xf32>
    %46 = arith.addf %43, %45 : vector<2x64xf32>
    %cst_33 = arith.constant 0.000000e+00 : f32
    %47 = vector.broadcast %cst_33 : f32 to vector<2x64xf32>
    %48 = arith.maximumf %46, %47 : vector<2x64xf32>
    %49 = arith.truncf %48 : vector<2x64xf32> to vector<2x64xbf16>
    %c0_34 = arith.constant 0 : index
    %c0_35 = arith.constant 0 : index
    %50 = vector.load %arg13[%c0_34, %c0_35] : memref<64x1024xbf16, #tpu.memory_space<vmem>>, vector<64x1024xbf16>
    %cst_36 = arith.constant dense<0.000000e+00> : vector<2x1024xf32>
    %51 = tpu.matmul %49, %50, %cst_36 {dimension_numbers = #tpu.dot_dimension_numbers<[1], [0], [0], [1], [0, 0, 1, 1], [], []>} : vector<2x64xbf16>, vector<64x1024xbf16>, vector<2x1024xf32> -> vector<2x1024xf32>
    %c0_37 = arith.constant 0 : index
    %c0_38 = arith.constant 0 : index
    %52 = vector.load %arg14[%c0_37, %c0_38] : memref<1x1024xf32, #tpu.memory_space<vmem>>, vector<1x1024xf32>
    %53 = vector.broadcast %52 : vector<1x1024xf32> to vector<2x1024xf32>
    %54 = arith.addf %51, %53 : vector<2x1024xf32>
    %c0_39 = arith.constant 0 : index
    %c0_40 = arith.constant 0 : index
    %55 = vector.load %arg15[%c0_39, %c0_40] : memref<2x1024xf32, #tpu.memory_space<vmem>>, vector<2x1024xf32>
    tpu.vector_store %arg15[%c0_39, %c0_40], %54 {strides = array<i32>} : memref<2x1024xf32, #tpu.memory_space<vmem>>, vector<2x1024xf32>,
    return
  }
  func.func @transform_0(%arg0: i32) -> (i32, i32) {
    %c0_i32 = arith.constant 0 : i32
    %c0_i32_0 = arith.constant 0 : i32
    return %arg0, %c0_i32 : i32, i32
  }
  func.func @transform_1(%arg0: i32) -> (i32, i32) {
    %c0_i32 = arith.constant 0 : i32
    %c0_i32_0 = arith.constant 0 : i32
    return %arg0, %c0_i32 : i32, i32
  }
  func.func @transform_2(%arg0: i32) -> (i32, i32) {
    %c0_i32 = arith.constant 0 : i32
    %c0_i32_0 = arith.constant 0 : i32
    %c0_i32_1 = arith.constant 0 : i32
    return %c0_i32, %c0_i32_0 : i32, i32
  }
  func.func @transform_3(%arg0: i32) -> (i32, i32) {
    %c0_i32 = arith.constant 0 : i32
    %c0_i32_0 = arith.constant 0 : i32
    %c0_i32_1 = arith.constant 0 : i32
    return %c0_i32, %c0_i32_0 : i32, i32
  }
  func.func @transform_4(%arg0: i32) -> (i32, i32) {
    %c0_i32 = arith.constant 0 : i32
    %c0_i32_0 = arith.constant 0 : i32
    %c0_i32_1 = arith.constant 0 : i32
    return %c0_i32, %c0_i32_0 : i32, i32
  }
  func.func @transform_5(%arg0: i32) -> (i32, i32) {
    %c0_i32 = arith.constant 0 : i32
    %c0_i32_0 = arith.constant 0 : i32
    %c0_i32_1 = arith.constant 0 : i32
    return %c0_i32, %c0_i32_0 : i32, i32
  }
  func.func @transform_6(%arg0: i32) -> (i32, i32) {
    %c0_i32 = arith.constant 0 : i32
    %c0_i32_0 = arith.constant 0 : i32
    %c0_i32_1 = arith.constant 0 : i32
    return %c0_i32, %c0_i32_0 : i32, i32
  }
  func.func @transform_7(%arg0: i32) -> (i32, i32) {
    %c0_i32 = arith.constant 0 : i32
    %c0_i32_0 = arith.constant 0 : i32
    %c0_i32_1 = arith.constant 0 : i32
    return %c0_i32, %c0_i32_0 : i32, i32
  }
  func.func @transform_8(%arg0: i32) -> (i32, i32) {
    %c0_i32 = arith.constant 0 : i32
    %c0_i32_0 = arith.constant 0 : i32
    %c0_i32_1 = arith.constant 0 : i32
    return %c0_i32, %c0_i32_0 : i32, i32
  }
  func.func @transform_9(%arg0: i32) -> (i32, i32) {
    %c0_i32 = arith.constant 0 : i32
    %c0_i32_0 = arith.constant 0 : i32
    %c0_i32_1 = arith.constant 0 : i32
    return %c0_i32, %c0_i32_0 : i32, i32
  }
  func.func @transform_10(%arg0: i32) -> (i32, i32) {
    %c0_i32 = arith.constant 0 : i32
    %c0_i32_0 = arith.constant 0 : i32
    %c0_i32_1 = arith.constant 0 : i32
    return %c0_i32, %c0_i32_0 : i32, i32
  }
  func.func @transform_11(%arg0: i32) -> (i32, i32) {
    %c0_i32 = arith.constant 0 : i32
    %c0_i32_0 = arith.constant 0 : i32
    %c0_i32_1 = arith.constant 0 : i32
    return %c0_i32, %c0_i32_0 : i32, i32
  }
  func.func @transform_12(%arg0: i32) -> (i32, i32) {
    %c0_i32 = arith.constant 0 : i32
    %c0_i32_0 = arith.constant 0 : i32
    %c0_i32_1 = arith.constant 0 : i32
    return %c0_i32, %c0_i32_0 : i32, i32
  }
  func.func @transform_13(%arg0: i32) -> (i32, i32) {
    %c0_i32 = arith.constant 0 : i32
    %c0_i32_0 = arith.constant 0 : i32
    %c0_i32_1 = arith.constant 0 : i32
    return %c0_i32, %c0_i32_0 : i32, i32
  }
  func.func @transform_14(%arg0: i32) -> (i32, i32) {
    %c0_i32 = arith.constant 0 : i32
    %c0_i32_0 = arith.constant 0 : i32
    return %arg0, %c0_i32 : i32, i32
  }
  func.func @transform_15(%arg0: i32) -> (i32, i32) {
    %c0_i32 = arith.constant 0 : i32
    %c0_i32_0 = arith.constant 0 : i32
    return %arg0, %c0_i32 : i32, i32
  }
}

</mosaic_0001>

<llo_original>
// kernel: tpu_custom_call.1
$region0: #{tpu_custom_call.1}
  #allocation0 [shape = 'u32[]', space=smem, size = 0x4, offset = 0x4, fixed_abs, tag = 'smem constant byte address 0x4 - core index']
  #allocation1 [shape = 'u32[72,128]{1,0:T(1,128)}', space=vmem, size = 0x9000, scoped, tag = 'internal scratch']
  %s0 = inlined_call_operand.vmem [shape: f32[2,1024], index: 0, kind: input, shape index: {}]
  %s1 = inlined_call_operand.vmem [shape: f32[2,128], index: 1, kind: input, shape index: {}]
  %s2 = inlined_call_operand.vmem [shape: f32[1024,64], index: 2, kind: input, shape index: {}]
  %s3 = inlined_call_operand.vmem [shape: f32[1,64], index: 3, kind: input, shape index: {}]
  %s4 = inlined_call_operand.vmem [shape: bf16[64,64], index: 4, kind: input, shape index: {}]
  %s5 = inlined_call_operand.vmem [shape: f32[1,64], index: 5, kind: input, shape index: {}]
  %s6 = inlined_call_operand.vmem [shape: bf16[64,384], index: 6, kind: input, shape index: {}]
  %s7 = inlined_call_operand.vmem [shape: f32[1,384], index: 7, kind: input, shape index: {}]
  %s8 = inlined_call_operand.vmem [shape: bf16[128,64], index: 8, kind: input, shape index: {}]
  %s9 = inlined_call_operand.vmem [shape: f32[1,64], index: 9, kind: input, shape index: {}]
  %s10 = inlined_call_operand.vmem [shape: bf16[64,64], index: 10, kind: input, shape index: {}]
  %s11 = inlined_call_operand.vmem [shape: f32[1,64], index: 11, kind: input, shape index: {}]
  %s12 = inlined_call_operand.vmem [shape: bf16[64,1024], index: 12, kind: input, shape index: {}]
  %s13 = inlined_call_operand.vmem [shape: f32[1,1024], index: 13, kind: input, shape index: {}]
  %s14 = inlined_call_operand.hbm [shape: f32[2,1024], index: 14, kind: output, shape index: {0}]
  %s15 = inlined_call_operand.hbm [shape: f32[2,128], index: 15, kind: output, shape index: {1}]
  %16 = xla_tuple %s14, %s15
  %s17 = sld [smem:[#allocation0]]
  $region74: #{tpu_custom_call.1} parent=0
    _
  %s19 = ssub.s32 1, %s17
  %s20 = scalar_select 0, %s19, %s17
  $region1: #{tpu_custom_call.1} parent=0
    #allocation2 [shape = 'u8[8192]{0}', space=vmem, size = 0x2000, scoped, tag = 'output window, operand 0, single buffered']
    #allocation3 [shape = 's32[1]{0}', space=sflag, size = 0x4, scoped, tag = 'scoped memory for tpu_custom_call.1']
    #allocation4 [shape = 'u8[1024]{0}', space=vmem, size = 0x400, scoped, tag = 'output window, operand 1, single buffered']
    #allocation5 [shape = 's32[1]{0}', space=sflag, size = 0x4, scoped, tag = 'scoped memory for tpu_custom_call.1']
    %21 = vsyncpa [#allocation3], 0
    %22 = vsyncpa [#allocation5], 0
    // Predicated region
    $region2: #{tpu_custom_call.1} parent=1 // pred_check
      _
    $region3: #{tpu_custom_call.1} parent=1 // pred_check_branch
      %24 = sbr.rel (0) target = $region5
    $region4: #{tpu_custom_call.1} parent=1 // pred_region
      _
    $region5: #{tpu_custom_call.1} parent=1 // pred_fallthru
      _
    // Predicated region
    $region6: #{tpu_custom_call.1} parent=1 // pred_check
      _
    $region7: #{tpu_custom_call.1} parent=1 // pred_check_branch
      %26 = sbr.rel (0) target = $region9
    $region8: #{tpu_custom_call.1} parent=1 // pred_region
      _
    $region9: #{tpu_custom_call.1} parent=1 // pred_fallthru
      _
    // Predicated region
    $region10: #{tpu_custom_call.1} parent=1 // pred_check
      _
    $region11: #{tpu_custom_call.1} parent=1 // pred_check_branch
      %28 = sbr.rel (0) target = $region13
    $region12: #{tpu_custom_call.1} parent=1 // pred_region
      _
    $region13: #{tpu_custom_call.1} parent=1 // pred_fallthru
      _
    // Predicated region
    $region14: #{tpu_custom_call.1} parent=1 // pred_check
      _
    $region15: #{tpu_custom_call.1} parent=1 // pred_check_branch
      %30 = sbr.rel (0) target = $region17
    $region16: #{tpu_custom_call.1} parent=1 // pred_region
      _
    $region17: #{tpu_custom_call.1} parent=1 // pred_fallthru
      _
    // Predicated region
    $region18: #{tpu_custom_call.1} parent=1 // pred_check
      _
    $region19: #{tpu_custom_call.1} parent=1 // pred_check_branch
      %32 = sbr.rel (0) target = $region21
    $region20: #{tpu_custom_call.1} parent=1 // pred_region
      _
    $region21: #{tpu_custom_call.1} parent=1 // pred_fallthru
      _
    // Predicated region
    $region22: #{tpu_custom_call.1} parent=1 // pred_check
      _
    $region23: #{tpu_custom_call.1} parent=1 // pred_check_branch
      %34 = sbr.rel (0) target = $region25
    $region24: #{tpu_custom_call.1} parent=1 // pred_region
      _
    $region25: #{tpu_custom_call.1} parent=1 // pred_fallthru
      _
    // Predicated region
    $region26: #{tpu_custom_call.1} parent=1 // pred_check
      _
    $region27: #{tpu_custom_call.1} parent=1 // pred_check_branch
      %36 = sbr.rel (0) target = $region29
    $region28: #{tpu_custom_call.1} parent=1 // pred_region
      _
    $region29: #{tpu_custom_call.1} parent=1 // pred_fallthru
      _
    // Predicated region
    $region30: #{tpu_custom_call.1} parent=1 // pred_check
      _
    $region31: #{tpu_custom_call.1} parent=1 // pred_check_branch
      %38 = sbr.rel (0) target = $region33
    $region32: #{tpu_custom_call.1} parent=1 // pred_region
      _
    $region33: #{tpu_custom_call.1} parent=1 // pred_fallthru
      _
    // Predicated region
    $region34: #{tpu_custom_call.1} parent=1 // pred_check
      _
    $region35: #{tpu_custom_call.1} parent=1 // pred_check_branch
      %40 = sbr.rel (0) target = $region37
    $region36: #{tpu_custom_call.1} parent=1 // pred_region
      _
    $region37: #{tpu_custom_call.1} parent=1 // pred_fallthru
      _
    // Predicated region
    $region38: #{tpu_custom_call.1} parent=1 // pred_check
      _
    $region39: #{tpu_custom_call.1} parent=1 // pred_check_branch
      %42 = sbr.rel (0) target = $region41
    $region40: #{tpu_custom_call.1} parent=1 // pred_region
      _
    $region41: #{tpu_custom_call.1} parent=1 // pred_fallthru
      _
    // Predicated region
    $region42: #{tpu_custom_call.1} parent=1 // pred_check
      _
    $region43: #{tpu_custom_call.1} parent=1 // pred_check_branch
      %44 = sbr.rel (0) target = $region45
    $region44: #{tpu_custom_call.1} parent=1 // pred_region
      _
    $region45: #{tpu_custom_call.1} parent=1 // pred_fallthru
      _
    // Predicated region
    $region46: #{tpu_custom_call.1} parent=1 // pred_check
      _
    $region47: #{tpu_custom_call.1} parent=1 // pred_check_branch
      %46 = sbr.rel (0) target = $region49
    $region48: #{tpu_custom_call.1} parent=1 // pred_region
      _
    $region49: #{tpu_custom_call.1} parent=1 // pred_fallthru
      _
    // Predicated region
    $region50: #{tpu_custom_call.1} parent=1 // pred_check
      _
    $region51: #{tpu_custom_call.1} parent=1 // pred_check_branch
      %48 = sbr.rel (0) target = $region53
    $region52: #{tpu_custom_call.1} parent=1 // pred_region
      _
    $region53: #{tpu_custom_call.1} parent=1 // pred_fallthru
      _
    // Predicated region
    $region54: #{tpu_custom_call.1} parent=1 // pred_check
      _
    $region55: #{tpu_custom_call.1} parent=1 // pred_check_branch
      %50 = sbr.rel (0) target = $region57
    $region56: #{tpu_custom_call.1} parent=1 // pred_region
      _
    $region57: #{tpu_custom_call.1} parent=1 // pred_fallthru
      _
    %v52 = vld [vmem:[%s0] sm:$0xff]
    %v53 = vld [vmem:[%s0 + $0x8] sm:$0xff]
    %v54 = vld [vmem:[%s2] sm:$0xff]
    %v55 = vld [vmem:[%s2 + $0x8] sm:$0xff]
    %v56 = vld [vmem:[%s2 + $0x10] sm:$0xff]
    %v57 = vld [vmem:[%s2 + $0x18] sm:$0xff]
    %v58 = vld [vmem:[%s2 + $0x20] sm:$0xff]
    %v59 = vld [vmem:[%s2 + $0x28] sm:$0xff]
    %v60 = vld [vmem:[%s2 + $0x30] sm:$0xff]
    %v61 = vld [vmem:[%s2 + $0x38] sm:$0xff]
    %v62 = vld [vmem:[%s2 + $0x40] sm:$0xff]
    %v63 = vld [vmem:[%s2 + $0x48] sm:$0xff]
    %v64 = vld [vmem:[%s2 + $0x50] sm:$0xff]
    %v65 = vld [vmem:[%s2 + $0x58] sm:$0xff]
    %v66 = vld [vmem:[%s2 + $0x60] sm:$0xff]
    %v67 = vld [vmem:[%s2 + $0x68] sm:$0xff]
    %v68 = vld [vmem:[%s2 + $0x70] sm:$0xff]
    %v69 = vld [vmem:[%s2 + $0x78] sm:$0xff]
    %v70 = vld [vmem:[%s2 + $0x80] sm:$0xff]
    %v71 = vld [vmem:[%s2 + $0x88] sm:$0xff]
    %v72 = vld [vmem:[%s2 + $0x90] sm:$0xff]
    %v73 = vld [vmem:[%s2 + $0x98] sm:$0xff]
    %v74 = vld [vmem:[%s2 + $0xa0] sm:$0xff]
    %v75 = vld [vmem:[%s2 + $0xa8] sm:$0xff]
    %v76 = vld [vmem:[%s2 + $0xb0] sm:$0xff]
    %v77 = vld [vmem:[%s2 + $0xb8] sm:$0xff]
    %v78 = vld [vmem:[%s2 + $0xc0] sm:$0xff]
    %v79 = vld [vmem:[%s2 + $0xc8] sm:$0xff]
    %v80 = vld [vmem:[%s2 + $0xd0] sm:$0xff]
    %v81 = vld [vmem:[%s2 + $0xd8] sm:$0xff]
    %v82 = vld [vmem:[%s2 + $0xe0] sm:$0xff]
    %v83 = vld [vmem:[%s2 + $0xe8] sm:$0xff]
    %v84 = vld [vmem:[%s2 + $0xf0] sm:$0xff]
    %v85 = vld [vmem:[%s2 + $0xf8] sm:$0xff]
    %v86 = vld [vmem:[%s2 + $0x100] sm:$0xff]
    %v87 = vld [vmem:[%s2 + $0x108] sm:$0xff]
    %v88 = vld [vmem:[%s2 + $0x110] sm:$0xff]
    %v89 = vld [vmem:[%s2 + $0x118] sm:$0xff]
    %v90 = vld [vmem:[%s2 + $0x120] sm:$0xff]
    %v91 = vld [vmem:[%s2 + $0x128] sm:$0xff]
    %v92 = vld [vmem:[%s2 + $0x130] sm:$0xff]
    %v93 = vld [vmem:[%s2 + $0x138] sm:$0xff]
    %v94 = vld [vmem:[%s2 + $0x140] sm:$0xff]
    %v95 = vld [vmem:[%s2 + $0x148] sm:$0xff]
    %v96 = vld [vmem:[%s2 + $0x150] sm:$0xff]
    %v97 = vld [vmem:[%s2 + $0x158] sm:$0xff]
    %v98 = vld [vmem:[%s2 + $0x160] sm:$0xff]
    %v99 = vld [vmem:[%s2 + $0x168] sm:$0xff]
    %v100 = vld [vmem:[%s2 + $0x170] sm:$0xff]
    %v101 = vld [vmem:[%s2 + $0x178] sm:$0xff]
    %v102 = vld [vmem:[%s2 + $0x180] sm:$0xff]
    %v103 = vld [vmem:[%s2 + $0x188] sm:$0xff]
    %v104 = vld [vmem:[%s2 + $0x190] sm:$0xff]
    %v105 = vld [vmem:[%s2 + $0x198] sm:$0xff]
    %v106 = vld [vmem:[%s2 + $0x1a0] sm:$0xff]
    %v107 = vld [vmem:[%s2 + $0x1a8] sm:$0xff]
    %v108 = vld [vmem:[%s2 + $0x1b0] sm:$0xff]
    %v109 = vld [vmem:[%s2 + $0x1b8] sm:$0xff]
    %v110 = vld [vmem:[%s2 + $0x1c0] sm:$0xff]
    %v111 = vld [vmem:[%s2 + $0x1c8] sm:$0xff]
    %v112 = vld [vmem:[%s2 + $0x1d0] sm:$0xff]
    %v113 = vld [vmem:[%s2 + $0x1d8] sm:$0xff]
    %v114 = vld [vmem:[%s2 + $0x1e0] sm:$0xff]
    %v115 = vld [vmem:[%s2 + $0x1e8] sm:$0xff]
    %v116 = vld [vmem:[%s2 + $0x1f0] sm:$0xff]
    %v117 = vld [vmem:[%s2 + $0x1f8] sm:$0xff]
    %v118 = vld [vmem:[%s2 + $0x200] sm:$0xff]
    %v119 = vld [vmem:[%s2 + $0x208] sm:$0xff]
    %v120 = vld [vmem:[%s2 + $0x210] sm:$0xff]
    %v121 = vld [vmem:[%s2 + $0x218] sm:$0xff]
    %v122 = vld [vmem:[%s2 + $0x220] sm:$0xff]
    %v123 = vld [vmem:[%s2 + $0x228] sm:$0xff]
    %v124 = vld [vmem:[%s2 + $0x230] sm:$0xff]
    %v125 = vld [vmem:[%s2 + $0x238] sm:$0xff]
    %v126 = vld [vmem:[%s2 + $0x240] sm:$0xff]
    %v127 = vld [vmem:[%s2 + $0x248] sm:$0xff]
    %v128 = vld [vmem:[%s2 + $0x250] sm:$0xff]
    %v129 = vld [vmem:[%s2 + $0x258] sm:$0xff]
    %v130 = vld [vmem:[%s2 + $0x260] sm:$0xff]
    %v131 = vld [vmem:[%s2 + $0x268] sm:$0xff]
    %v132 = vld [vmem:[%s2 + $0x270] sm:$0xff]
    %v133 = vld [vmem:[%s2 + $0x278] sm:$0xff]
    %v134 = vld [vmem:[%s2 + $0x280] sm:$0xff]
    %v135 = vld [vmem:[%s2 + $0x288] sm:$0xff]
    %v136 = vld [vmem:[%s2 + $0x290] sm:$0xff]
    %v137 = vld [vmem:[%s2 + $0x298] sm:$0xff]
    %v138 = vld [vmem:[%s2 + $0x2a0] sm:$0xff]
    %v139 = vld [vmem:[%s2 + $0x2a8] sm:$0xff]
    %v140 = vld [vmem:[%s2 + $0x2b0] sm:$0xff]
    %v141 = vld [vmem:[%s2 + $0x2b8] sm:$0xff]
    %v142 = vld [vmem:[%s2 + $0x2c0] sm:$0xff]
    %v143 = vld [vmem:[%s2 + $0x2c8] sm:$0xff]
    %v144 = vld [vmem:[%s2 + $0x2d0] sm:$0xff]
    %v145 = vld [vmem:[%s2 + $0x2d8] sm:$0xff]
    %v146 = vld [vmem:[%s2 + $0x2e0] sm:$0xff]
    %v147 = vld [vmem:[%s2 + $0x2e8] sm:$0xff]
    %v148 = vld [vmem:[%s2 + $0x2f0] sm:$0xff]
    %v149 = vld [vmem:[%s2 + $0x2f8] sm:$0xff]
    %v150 = vld [vmem:[%s2 + $0x300] sm:$0xff]
    %v151 = vld [vmem:[%s2 + $0x308] sm:$0xff]
    %v152 = vld [vmem:[%s2 + $0x310] sm:$0xff]
    %v153 = vld [vmem:[%s2 + $0x318] sm:$0xff]
    %v154 = vld [vmem:[%s2 + $0x320] sm:$0xff]
    %v155 = vld [vmem:[%s2 + $0x328] sm:$0xff]
    %v156 = vld [vmem:[%s2 + $0x330] sm:$0xff]
    %v157 = vld [vmem:[%s2 + $0x338] sm:$0xff]
    %v158 = vld [vmem:[%s2 + $0x340] sm:$0xff]
    %v159 = vld [vmem:[%s2 + $0x348] sm:$0xff]
    %v160 = vld [vmem:[%s2 + $0x350] sm:$0xff]
    %v161 = vld [vmem:[%s2 + $0x358] sm:$0xff]
    %v162 = vld [vmem:[%s2 + $0x360] sm:$0xff]
    %v163 = vld [vmem:[%s2 + $0x368] sm:$0xff]
    %v164 = vld [vmem:[%s2 + $0x370] sm:$0xff]
    %v165 = vld [vmem:[%s2 + $0x378] sm:$0xff]
    %v166 = vld [vmem:[%s2 + $0x380] sm:$0xff]
    %v167 = vld [vmem:[%s2 + $0x388] sm:$0xff]
    %v168 = vld [vmem:[%s2 + $0x390] sm:$0xff]
    %v169 = vld [vmem:[%s2 + $0x398] sm:$0xff]
    %v170 = vld [vmem:[%s2 + $0x3a0] sm:$0xff]
    %v171 = vld [vmem:[%s2 + $0x3a8] sm:$0xff]
    %v172 = vld [vmem:[%s2 + $0x3b0] sm:$0xff]
    %v173 = vld [vmem:[%s2 + $0x3b8] sm:$0xff]
    %v174 = vld [vmem:[%s2 + $0x3c0] sm:$0xff]
    %v175 = vld [vmem:[%s2 + $0x3c8] sm:$0xff]
    %v176 = vld [vmem:[%s2 + $0x3d0] sm:$0xff]
    %v177 = vld [vmem:[%s2 + $0x3d8] sm:$0xff]
    %v178 = vld [vmem:[%s2 + $0x3e0] sm:$0xff]
    %v179 = vld [vmem:[%s2 + $0x3e8] sm:$0xff]
    %v180 = vld [vmem:[%s2 + $0x3f0] sm:$0xff]
    %v181 = vld [vmem:[%s2 + $0x3f8] sm:$0xff]
    %v182 = vld [vmem:[%s3] sm:$0x1]
    %v184 = vperm.slane %v182, 0
    %188 = vst [vmem:[#allocation1] ss:$4 sm:$0xff] %v52
    %s189 = scalar_lea.vmem [#allocation1], 32
    %190 = vst [vmem:[%s189] ss:$4 sm:$0xff] %v53
    %v191 = vld.sshfl [vmem:[#allocation1] sm:$0xff pattern:$0x73625140]
    %v192 = vld.sshfl [vmem:[#allocation1 + $0x8] sm:$0xff pattern:$0x73625140]
    %v193 = vld.sshfl [vmem:[#allocation1 + $0x10] sm:$0xff pattern:$0x73625140]
    %v194 = vld.sshfl [vmem:[#allocation1 + $0x18] sm:$0xff pattern:$0x73625140]
    %v195 = vld.sshfl [vmem:[#allocation1 + $0x20] sm:$0xff pattern:$0x73625140]
    %v196 = vld.sshfl [vmem:[#allocation1 + $0x28] sm:$0xff pattern:$0x73625140]
    %v197 = vld.sshfl [vmem:[#allocation1 + $0x30] sm:$0xff pattern:$0x73625140]
    %v198 = vld.sshfl [vmem:[#allocation1 + $0x38] sm:$0xff pattern:$0x73625140]
    %207 = vmatpush.msra.mxu0 %v69
    %208 = vmatpush.msra.mxu0 %v68
    %209 = vmatpush.msra.mxu0 %v67
    %210 = vmatpush.msra.mxu0 %v66
    %211 = vmatpush.msra.mxu0 %v65
    %212 = vmatpush.msra.mxu0 %v64
    %213 = vmatpush.msra.mxu0 %v63
    %214 = vmatpush.msra.mxu0 %v62
    %215 = vmatpush.msra.mxu0 %v61
    %216 = vmatpush.msra.mxu0 %v60
    %217 = vmatpush.msra.mxu0 %v59
    %218 = vmatpush.msra.mxu0 %v58
    %219 = vmatpush.msra.mxu0 %v57
    %220 = vmatpush.msra.mxu0 %v56
    %221 = vmatpush.msra.mxu0 %v55
    %222 = vmatpush.msra.mxu0 %v54
    %223 = vmatmul.f32.gmra.mxu0 %v191
    %v224 = vpop.f32.mrf.mxu0
    %v225 = vadd.f32 %v184, %v224
    %226 = vdwg.mxu0
    %227 = vmatpush.msra.mxu0 %v85
    %228 = vmatpush.msra.mxu0 %v84
    %229 = vmatpush.msra.mxu0 %v83
    %230 = vmatpush.msra.mxu0 %v82
    %231 = vmatpush.msra.mxu0 %v81
    %232 = vmatpush.msra.mxu0 %v80
    %233 = vmatpush.msra.mxu0 %v79
    %234 = vmatpush.msra.mxu0 %v78
    %235 = vmatpush.msra.mxu0 %v77
    %236 = vmatpush.msra.mxu0 %v76
    %237 = vmatpush.msra.mxu0 %v75
    %238 = vmatpush.msra.mxu0 %v74
    %239 = vmatpush.msra.mxu0 %v73
    %240 = vmatpush.msra.mxu0 %v72
    %241 = vmatpush.msra.mxu0 %v71
    %242 = vmatpush.msra.mxu0 %v70
    %243 = vmatmul.f32.gmra.mxu0 %v192
    %v244 = vpop.f32.mrf.mxu0
    %v245 = vadd.f32 %v225, %v244
    %246 = vdwg.mxu0
    %247 = vmatpush.msra.mxu0 %v101
    %248 = vmatpush.msra.mxu0 %v100
    %249 = vmatpush.msra.mxu0 %v99
    %250 = vmatpush.msra.mxu0 %v98
    %251 = vmatpush.msra.mxu0 %v97
    %252 = vmatpush.msra.mxu0 %v96
    %253 = vmatpush.msra.mxu0 %v95
    %254 = vmatpush.msra.mxu0 %v94
    %255 = vmatpush.msra.mxu0 %v93
    %256 = vmatpush.msra.mxu0 %v92
    %257 = vmatpush.msra.mxu0 %v91
    %258 = vmatpush.msra.mxu0 %v90
    %259 = vmatpush.msra.mxu0 %v89
    %260 = vmatpush.msra.mxu0 %v88
    %261 = vmatpush.msra.mxu0 %v87
    %262 = vmatpush.msra.mxu0 %v86
    %263 = vmatmul.f32.gmra.mxu0 %v193
    %v264 = vpop.f32.mrf.mxu0
    %v265 = vadd.f32 %v245, %v264
    %266 = vdwg.mxu0
    %267 = vmatpush.msra.mxu0 %v117
    %268 = vmatpush.msra.mxu0 %v116
    %269 = vmatpush.msra.mxu0 %v115
    %270 = vmatpush.msra.mxu0 %v114
    %271 = vmatpush.msra.mxu0 %v113
    %272 = vmatpush.msra.mxu0 %v112
    %273 = vmatpush.msra.mxu0 %v111
    %274 = vmatpush.msra.mxu0 %v110
    %275 = vmatpush.msra.mxu0 %v109
    %276 = vmatpush.msra.mxu0 %v108
    %277 = vmatpush.msra.mxu0 %v107
    %278 = vmatpush.msra.mxu0 %v106
    %279 = vmatpush.msra.mxu0 %v105
    %280 = vmatpush.msra.mxu0 %v104
    %281 = vmatpush.msra.mxu0 %v103
    %282 = vmatpush.msra.mxu0 %v102
    %283 = vmatmul.f32.gmra.mxu0 %v194
    %v284 = vpop.f32.mrf.mxu0
    %v285 = vadd.f32 %v265, %v284
    %286 = vdwg.mxu0
    %287 = vmatpush.msra.mxu0 %v133
    %288 = vmatpush.msra.mxu0 %v132
    %289 = vmatpush.msra.mxu0 %v131
    %290 = vmatpush.msra.mxu0 %v130
    %291 = vmatpush.msra.mxu0 %v129
    %292 = vmatpush.msra.mxu0 %v128
    %293 = vmatpush.msra.mxu0 %v127
    %294 = vmatpush.msra.mxu0 %v126
    %295 = vmatpush.msra.mxu0 %v125
    %296 = vmatpush.msra.mxu0 %v124
    %297 = vmatpush.msra.mxu0 %v123
    %298 = vmatpush.msra.mxu0 %v122
    %299 = vmatpush.msra.mxu0 %v121
    %300 = vmatpush.msra.mxu0 %v120
    %301 = vmatpush.msra.mxu0 %v119
    %302 = vmatpush.msra.mxu0 %v118
    %303 = vmatmul.f32.gmra.mxu0 %v195
    %v304 = vpop.f32.mrf.mxu0
    %v305 = vadd.f32 %v285, %v304
    %306 = vdwg.mxu0
    %307 = vmatpush.msra.mxu0 %v149
    %308 = vmatpush.msra.mxu0 %v148
    %309 = vmatpush.msra.mxu0 %v147
    %310 = vmatpush.msra.mxu0 %v146
    %311 = vmatpush.msra.mxu0 %v145
    %312 = vmatpush.msra.mxu0 %v144
    %313 = vmatpush.msra.mxu0 %v143
    %314 = vmatpush.msra.mxu0 %v142
    %315 = vmatpush.msra.mxu0 %v141
    %316 = vmatpush.msra.mxu0 %v140
    %317 = vmatpush.msra.mxu0 %v139
    %318 = vmatpush.msra.mxu0 %v138
    %319 = vmatpush.msra.mxu0 %v137
    %320 = vmatpush.msra.mxu0 %v136
    %321 = vmatpush.msra.mxu0 %v135
    %322 = vmatpush.msra.mxu0 %v134
    %323 = vmatmul.f32.gmra.mxu0 %v196
    %v324 = vpop.f32.mrf.mxu0
    %v325 = vadd.f32 %v305, %v324
    %326 = vdwg.mxu0
    %327 = vmatpush.msra.mxu0 %v165
    %328 = vmatpush.msra.mxu0 %v164
    %329 = vmatpush.msra.mxu0 %v163
    %330 = vmatpush.msra.mxu0 %v162
    %331 = vmatpush.msra.mxu0 %v161
    %332 = vmatpush.msra.mxu0 %v160
    %333 = vmatpush.msra.mxu0 %v159
    %334 = vmatpush.msra.mxu0 %v158
    %335 = vmatpush.msra.mxu0 %v157
    %336 = vmatpush.msra.mxu0 %v156
    %337 = vmatpush.msra.mxu0 %v155
    %338 = vmatpush.msra.mxu0 %v154
    %339 = vmatpush.msra.mxu0 %v153
    %340 = vmatpush.msra.mxu0 %v152
    %341 = vmatpush.msra.mxu0 %v151
    %342 = vmatpush.msra.mxu0 %v150
    %343 = vmatmul.f32.gmra.mxu0 %v197
    %v344 = vpop.f32.mrf.mxu0
    %v345 = vadd.f32 %v325, %v344
    %346 = vdwg.mxu0
    %347 = vmatpush.msra.mxu0 %v181
    %348 = vmatpush.msra.mxu0 %v180
    %349 = vmatpush.msra.mxu0 %v179
    %350 = vmatpush.msra.mxu0 %v178
    %351 = vmatpush.msra.mxu0 %v177
    %352 = vmatpush.msra.mxu0 %v176
    %353 = vmatpush.msra.mxu0 %v175
    %354 = vmatpush.msra.mxu0 %v174
    %355 = vmatpush.msra.mxu0 %v173
    %356 = vmatpush.msra.mxu0 %v172
    %357 = vmatpush.msra.mxu0 %v171
    %358 = vmatpush.msra.mxu0 %v170
    %359 = vmatpush.msra.mxu0 %v169
    %360 = vmatpush.msra.mxu0 %v168
    %361 = vmatpush.msra.mxu0 %v167
    %362 = vmatpush.msra.mxu0 %v166
    %363 = vmatmul.f32.gmra.mxu0 %v198
    %v364 = vpop.f32.mrf.mxu0
    %v365 = vadd.f32 %v345, %v364
    %366 = vdwg.mxu0
    %v367 = vmax.f32 %v365, 0.0
    %v368 = vpack.c.bf16 %v367, %v367
    %v369 = vld [vmem:[%s4] sm:$0xf]
    %v370 = vld [vmem:[%s4 + $0x4] sm:$0xf]
    %v371 = vld [vmem:[%s4 + $0x8] sm:$0xf]
    %v372 = vld [vmem:[%s4 + $0xc] sm:$0xf]
    %v373 = vld [vmem:[%s4 + $0x10] sm:$0xf]
    %v374 = vld [vmem:[%s4 + $0x14] sm:$0xf]
    %v375 = vld [vmem:[%s4 + $0x18] sm:$0xf]
    %v376 = vld [vmem:[%s4 + $0x1c] sm:$0xf]
    %v377 = vld [vmem:[%s5] sm:$0x1]
    %v379 = vperm.slane %v377, 0
    %v389 = vunpack.c.l.b16 %v369
    %v390 = vunpack.c.l.b16 %v370
    %v391 = vunpack.c.l.b16 %v371
    %v392 = vunpack.c.l.b16 %v372
    %v393 = vunpack.c.l.b16 %v373
    %v394 = vunpack.c.l.b16 %v374
    %v395 = vunpack.c.l.b16 %v375
    %v396 = vunpack.c.l.b16 %v376
    %v397 = vpack.c.b16 %v390, %v389
    %v398 = vpack.c.b16 %v392, %v391
    %v399 = vpack.c.b16 %v394, %v393
    %v400 = vpack.c.b16 %v396, %v395
    %vm405 = vcmask 523264
    %v407 = vsel %vm405, %v368, 0
    %409 = vmatpush.bf16.msra.mxu0 0
    %410 = vmatpush.bf16.msra.mxu0 0
    %411 = vmatpush.bf16.msra.mxu0 0
    %412 = vmatpush.bf16.msra.mxu0 0
    %413 = vmatpush.bf16.msra.mxu0 %v400
    %414 = vmatpush.bf16.msra.mxu0 %v399
    %415 = vmatpush.bf16.msra.mxu0 %v398
    %416 = vmatpush.bf16.msra.mxu0 %v397
    %417 = vmatmul.bf16.gmra.mxu0 %v407
    %v418 = vpop.f32.mrf.mxu0
    %v419 = vadd.f32 %v379, %v418
    %v420 = vpop.f32.mrf.mxu0
    %421 = vdwg.mxu0
    %v422 = vmax.f32 %v419, 0.0
    %v423 = vpack.c.bf16 %v422, %v422
    %v424 = vld [vmem:[%s6] sm:$0xff]
    %v425 = vld [vmem:[%s6 + $0x8] sm:$0xf]
    %v426 = vld [vmem:[%s6 + $0xc] sm:$0xff]
    %v427 = vld [vmem:[%s6 + $0x14] sm:$0xf]
    %v428 = vld [vmem:[%s6 + $0x18] sm:$0xff]
    %v429 = vld [vmem:[%s6 + $0x20] sm:$0xf]
    %v430 = vld [vmem:[%s6 + $0x24] sm:$0xff]
    %v431 = vld [vmem:[%s6 + $0x2c] sm:$0xf]
    %v432 = vld [vmem:[%s6 + $0x30] sm:$0xff]
    %v433 = vld [vmem:[%s6 + $0x38] sm:$0xf]
    %v434 = vld [vmem:[%s6 + $0x3c] sm:$0xff]
    %v435 = vld [vmem:[%s6 + $0x44] sm:$0xf]
    %v436 = vld [vmem:[%s6 + $0x48] sm:$0xff]
    %v437 = vld [vmem:[%s6 + $0x50] sm:$0xf]
    %v438 = vld [vmem:[%s6 + $0x54] sm:$0xff]
    %v439 = vld [vmem:[%s6 + $0x5c] sm:$0xf]
    %v440 = vld [vmem:[%s7] sm:$0x7]
    %v442 = vperm.slane %v440, 0
    %v443 = vperm.slane %v440, 1
    %v444 = vperm.slane %v440, 2
    %v464 = vunpack.c.l.b16 %v424
    %v465 = vunpack.c.h.b16 %v424
    %v466 = vunpack.c.l.b16 %v425
    %v467 = vunpack.c.l.b16 %v426
    %v468 = vunpack.c.h.b16 %v426
    %v469 = vunpack.c.l.b16 %v427
    %v470 = vunpack.c.l.b16 %v428
    %v471 = vunpack.c.h.b16 %v428
    %v472 = vunpack.c.l.b16 %v429
    %v473 = vunpack.c.l.b16 %v430
    %v474 = vunpack.c.h.b16 %v430
    %v475 = vunpack.c.l.b16 %v431
    %v476 = vunpack.c.l.b16 %v432
    %v477 = vunpack.c.h.b16 %v432
    %v478 = vunpack.c.l.b16 %v433
    %v479 = vunpack.c.l.b16 %v434
    %v480 = vunpack.c.h.b16 %v434
    %v481 = vunpack.c.l.b16 %v435
    %v482 = vunpack.c.l.b16 %v436
    %v483 = vunpack.c.h.b16 %v436
    %v484 = vunpack.c.l.b16 %v437
    %v485 = vunpack.c.l.b16 %v438
    %v486 = vunpack.c.h.b16 %v438
    %v487 = vunpack.c.l.b16 %v439
    %v488 = vpack.c.b16 %v467, %v464
    %v489 = vpack.c.b16 %v468, %v465
    %v490 = vpack.c.b16 %v469, %v466
    %v491 = vpack.c.b16 %v473, %v470
    %v492 = vpack.c.b16 %v474, %v471
    %v493 = vpack.c.b16 %v475, %v472
    %v494 = vpack.c.b16 %v479, %v476
    %v495 = vpack.c.b16 %v480, %v477
    %v496 = vpack.c.b16 %v481, %v478
    %v497 = vpack.c.b16 %v485, %v482
    %v498 = vpack.c.b16 %v486, %v483
    %v499 = vpack.c.b16 %v487, %v484
    %v513 = vsel %vm405, %v423, 0
    %515 = vmatpush.bf16.msra.mxu0 0
    %516 = vmatpush.bf16.msra.mxu0 0
    %517 = vmatpush.bf16.msra.mxu0 0
    %518 = vmatpush.bf16.msra.mxu0 0
    %519 = vmatpush.bf16.msra.mxu0 %v497
    %520 = vmatpush.bf16.msra.mxu0 %v494
    %521 = vmatpush.bf16.msra.mxu0 %v491
    %522 = vmatpush.bf16.msra.mxu0 %v488
    %523 = vmatmul.bf16.gmra.mxu0 %v513
    %v524 = vpop.f32.mrf.mxu0
    %v525 = vadd.f32 %v442, %v524
    %v526 = vpop.f32.mrf.mxu0
    %527 = vdwg.mxu0
    %528 = vmatpush.bf16.msra.mxu0 0
    %529 = vmatpush.bf16.msra.mxu0 0
    %530 = vmatpush.bf16.msra.mxu0 0
    %531 = vmatpush.bf16.msra.mxu0 0
    %532 = vmatpush.bf16.msra.mxu0 %v498
    %533 = vmatpush.bf16.msra.mxu0 %v495
    %534 = vmatpush.bf16.msra.mxu0 %v492
    %535 = vmatpush.bf16.msra.mxu0 %v489
    %536 = vmatmul.bf16.gmra.mxu0 %v513
    %v537 = vpop.f32.mrf.mxu0
    %v538 = vadd.f32 %v443, %v537
    %v539 = vpop.f32.mrf.mxu0
    %540 = vdwg.mxu0
    %541 = vmatpush.bf16.msra.mxu0 0
    %542 = vmatpush.bf16.msra.mxu0 0
    %543 = vmatpush.bf16.msra.mxu0 0
    %544 = vmatpush.bf16.msra.mxu0 0
    %545 = vmatpush.bf16.msra.mxu0 %v499
    %546 = vmatpush.bf16.msra.mxu0 %v496
    %547 = vmatpush.bf16.msra.mxu0 %v493
    %548 = vmatpush.bf16.msra.mxu0 %v490
    %549 = vmatmul.bf16.gmra.mxu0 %v513
    %v550 = vpop.f32.mrf.mxu0
    %v551 = vadd.f32 %v444, %v550
    %v552 = vpop.f32.mrf.mxu0
    %553 = vdwg.mxu0
    %v554 = vld [vmem:[%s1] sm:$0x3]
    %v555 = vmul.f32 %v551, 0.5
    %v556 = vmul.f32 %v555, 1.442695
    %v557 = vpow.pop %v556
    %v558 = vmul.f32 %v554, %v557
    %v559 = vadd.f32 %v538, %v558
    %v560 = vadd.f32 %v525, %v559
    %561 = vst [vmem:[#allocation4] sm:$0x3] %v560
    %v562 = vpack.c.bf16 %v559, %v559
    %v563 = vld [vmem:[%s8] sm:$0xf]
    %v564 = vld [vmem:[%s8 + $0x4] sm:$0xf]
    %v565 = vld [vmem:[%s8 + $0x8] sm:$0xf]
    %v566 = vld [vmem:[%s8 + $0xc] sm:$0xf]
    %v567 = vld [vmem:[%s8 + $0x10] sm:$0xf]
    %v568 = vld [vmem:[%s8 + $0x14] sm:$0xf]
    %v569 = vld [vmem:[%s8 + $0x18] sm:$0xf]
    %v570 = vld [vmem:[%s8 + $0x1c] sm:$0xf]
    %v571 = vld [vmem:[%s8 + $0x20] sm:$0xf]
    %v572 = vld [vmem:[%s8 + $0x24] sm:$0xf]
    %v573 = vld [vmem:[%s8 + $0x28] sm:$0xf]
    %v574 = vld [vmem:[%s8 + $0x2c] sm:$0xf]
    %v575 = vld [vmem:[%s8 + $0x30] sm:$0xf]
    %v576 = vld [vmem:[%s8 + $0x34] sm:$0xf]
    %v577 = vld [vmem:[%s8 + $0x38] sm:$0xf]
    %v578 = vld [vmem:[%s8 + $0x3c] sm:$0xf]
    %v579 = vld [vmem:[%s9] sm:$0x1]
    %v581 = vperm.slane %v579, 0
    %v599 = vunpack.c.l.b16 %v563
    %v600 = vunpack.c.l.b16 %v564
    %v601 = vunpack.c.l.b16 %v565
    %v602 = vunpack.c.l.b16 %v566
    %v603 = vunpack.c.l.b16 %v567
    %v604 = vunpack.c.l.b16 %v568
    %v605 = vunpack.c.l.b16 %v569
    %v606 = vunpack.c.l.b16 %v570
    %v607 = vunpack.c.l.b16 %v571
    %v608 = vunpack.c.l.b16 %v572
    %v609 = vunpack.c.l.b16 %v573
    %v610 = vunpack.c.l.b16 %v574
    %v611 = vunpack.c.l.b16 %v575
    %v612 = vunpack.c.l.b16 %v576
    %v613 = vunpack.c.l.b16 %v577
    %v614 = vunpack.c.l.b16 %v578
    %v615 = vpack.c.b16 %v600, %v599
    %v616 = vpack.c.b16 %v602, %v601
    %v617 = vpack.c.b16 %v604, %v603
    %v618 = vpack.c.b16 %v606, %v605
    %v619 = vpack.c.b16 %v608, %v607
    %v620 = vpack.c.b16 %v610, %v609
    %v621 = vpack.c.b16 %v612, %v611
    %v622 = vpack.c.b16 %v614, %v613
    %631 = vmatpush.bf16.msra.mxu0 %v622
    %632 = vmatpush.bf16.msra.mxu0 %v621
    %633 = vmatpush.bf16.msra.mxu0 %v620
    %634 = vmatpush.bf16.msra.mxu0 %v619
    %635 = vmatpush.bf16.msra.mxu0 %v618
    %636 = vmatpush.bf16.msra.mxu0 %v617
    %637 = vmatpush.bf16.msra.mxu0 %v616
    %638 = vmatpush.bf16.msra.mxu0 %v615
    %639 = vmatmul.bf16.gmra.mxu0 %v562
    %v640 = vpop.f32.mrf.mxu0
    %v641 = vadd.f32 %v581, %v640
    %v642 = vpop.f32.mrf.mxu0
    %643 = vdwg.mxu0
    %v644 = vmax.f32 %v641, 0.0
    %v645 = vpack.c.bf16 %v644, %v644
    %v646 = vld [vmem:[%s10] sm:$0xf]
    %v647 = vld [vmem:[%s10 + $0x4] sm:$0xf]
    %v648 = vld [vmem:[%s10 + $0x8] sm:$0xf]
    %v649 = vld [vmem:[%s10 + $0xc] sm:$0xf]
    %v650 = vld [vmem:[%s10 + $0x10] sm:$0xf]
    %v651 = vld [vmem:[%s10 + $0x14] sm:$0xf]
    %v652 = vld [vmem:[%s10 + $0x18] sm:$0xf]
    %v653 = vld [vmem:[%s10 + $0x1c] sm:$0xf]
    %v654 = vld [vmem:[%s11] sm:$0x1]
    %v656 = vperm.slane %v654, 0
    %v666 = vunpack.c.l.b16 %v646
    %v667 = vunpack.c.l.b16 %v647
    %v668 = vunpack.c.l.b16 %v648
    %v669 = vunpack.c.l.b16 %v649
    %v670 = vunpack.c.l.b16 %v650
    %v671 = vunpack.c.l.b16 %v651
    %v672 = vunpack.c.l.b16 %v652
    %v673 = vunpack.c.l.b16 %v653
    %v674 = vpack.c.b16 %v667, %v666
    %v675 = vpack.c.b16 %v669, %v668
    %v676 = vpack.c.b16 %v671, %v670
    %v677 = vpack.c.b16 %v673, %v672
    %v683 = vsel %vm405, %v645, 0
    %685 = vmatpush.bf16.msra.mxu0 0
    %686 = vmatpush.bf16.msra.mxu0 0
    %687 = vmatpush.bf16.msra.mxu0 0
    %688 = vmatpush.bf16.msra.mxu0 0
    %689 = vmatpush.bf16.msra.mxu0 %v677
    %690 = vmatpush.bf16.msra.mxu0 %v676
    %691 = vmatpush.bf16.msra.mxu0 %v675
    %692 = vmatpush.bf16.msra.mxu0 %v674
    %693 = vmatmul.bf16.gmra.mxu0 %v683
    %v694 = vpop.f32.mrf.mxu0
    %v695 = vadd.f32 %v656, %v694
    %v696 = vpop.f32.mrf.mxu0
    %697 = vdwg.mxu0
    %v698 = vmax.f32 %v695, 0.0
    %v699 = vpack.c.bf16 %v698, %v698
    %v700 = vld [vmem:[%s12] sm:$0xff]
    %v701 = vld [vmem:[%s12 + $0x8] sm:$0xff]
    %v702 = vld [vmem:[%s12 + $0x10] sm:$0xff]
    %v703 = vld [vmem:[%s12 + $0x18] sm:$0xff]
    %v704 = vld [vmem:[%s12 + $0x20] sm:$0xff]
    %v705 = vld [vmem:[%s12 + $0x28] sm:$0xff]
    %v706 = vld [vmem:[%s12 + $0x30] sm:$0xff]
    %v707 = vld [vmem:[%s12 + $0x38] sm:$0xff]
    %v708 = vld [vmem:[%s12 + $0x40] sm:$0xff]
    %v709 = vld [vmem:[%s12 + $0x48] sm:$0xff]
    %v710 = vld [vmem:[%s12 + $0x50] sm:$0xff]
    %v711 = vld [vmem:[%s12 + $0x58] sm:$0xff]
    %v712 = vld [vmem:[%s12 + $0x60] sm:$0xff]
    %v713 = vld [vmem:[%s12 + $0x68] sm:$0xff]
    %v714 = vld [vmem:[%s12 + $0x70] sm:$0xff]
    %v715 = vld [vmem:[%s12 + $0x78] sm:$0xff]
    %v716 = vld [vmem:[%s12 + $0x80] sm:$0xff]
    %v717 = vld [vmem:[%s12 + $0x88] sm:$0xff]
    %v718 = vld [vmem:[%s12 + $0x90] sm:$0xff]
    %v719 = vld [vmem:[%s12 + $0x98] sm:$0xff]
    %v720 = vld [vmem:[%s12 + $0xa0] sm:$0xff]
    %v721 = vld [vmem:[%s12 + $0xa8] sm:$0xff]
    %v722 = vld [vmem:[%s12 + $0xb0] sm:$0xff]
    %v723 = vld [vmem:[%s12 + $0xb8] sm:$0xff]
    %v724 = vld [vmem:[%s12 + $0xc0] sm:$0xff]
    %v725 = vld [vmem:[%s12 + $0xc8] sm:$0xff]
    %v726 = vld [vmem:[%s12 + $0xd0] sm:$0xff]
    %v727 = vld [vmem:[%s12 + $0xd8] sm:$0xff]
    %v728 = vld [vmem:[%s12 + $0xe0] sm:$0xff]
    %v729 = vld [vmem:[%s12 + $0xe8] sm:$0xff]
    %v730 = vld [vmem:[%s12 + $0xf0] sm:$0xff]
    %v731 = vld [vmem:[%s12 + $0xf8] sm:$0xff]
    %v732 = vld [vmem:[%s13] sm:$0xff]
    %v734 = vperm.slane %v732, 0
    %v735 = vperm.slane %v732, 1
    %v736 = vperm.slane %v732, 2
    %v737 = vperm.slane %v732, 3
    %v738 = vperm.slane %v732, 4
    %v739 = vperm.slane %v732, 5
    %v740 = vperm.slane %v732, 6
    %v741 = vperm.slane %v732, 7
    %v782 = vunpack.c.l.b16 %v700
    %v783 = vunpack.c.h.b16 %v700
    %v784 = vunpack.c.l.b16 %v701
    %v785 = vunpack.c.h.b16 %v701
    %v786 = vunpack.c.l.b16 %v702
    %v787 = vunpack.c.h.b16 %v702
    %v788 = vunpack.c.l.b16 %v703
    %v789 = vunpack.c.h.b16 %v703
    %v790 = vunpack.c.l.b16 %v704
    %v791 = vunpack.c.h.b16 %v704
    %v792 = vunpack.c.l.b16 %v705
    %v793 = vunpack.c.h.b16 %v705
    %v794 = vunpack.c.l.b16 %v706
    %v795 = vunpack.c.h.b16 %v706
    %v796 = vunpack.c.l.b16 %v707
    %v797 = vunpack.c.h.b16 %v707
    %v798 = vunpack.c.l.b16 %v708
    %v799 = vunpack.c.h.b16 %v708
    %v800 = vunpack.c.l.b16 %v709
    %v801 = vunpack.c.h.b16 %v709
    %v802 = vunpack.c.l.b16 %v710
    %v803 = vunpack.c.h.b16 %v710
    %v804 = vunpack.c.l.b16 %v711
    %v805 = vunpack.c.h.b16 %v711
    %v806 = vunpack.c.l.b16 %v712
    %v807 = vunpack.c.h.b16 %v712
    %v808 = vunpack.c.l.b16 %v713
    %v809 = vunpack.c.h.b16 %v713
    %v810 = vunpack.c.l.b16 %v714
    %v811 = vunpack.c.h.b16 %v714
    %v812 = vunpack.c.l.b16 %v715
    %v813 = vunpack.c.h.b16 %v715
    %v814 = vunpack.c.l.b16 %v716
    %v815 = vunpack.c.h.b16 %v716
    %v816 = vunpack.c.l.b16 %v717
    %v817 = vunpack.c.h.b16 %v717
    %v818 = vunpack.c.l.b16 %v718
    %v819 = vunpack.c.h.b16 %v718
    %v820 = vunpack.c.l.b16 %v719
    %v821 = vunpack.c.h.b16 %v719
    %v822 = vunpack.c.l.b16 %v720
    %v823 = vunpack.c.h.b16 %v720
    %v824 = vunpack.c.l.b16 %v721
    %v825 = vunpack.c.h.b16 %v721
    %v826 = vunpack.c.l.b16 %v722
    %v827 = vunpack.c.h.b16 %v722
    %v828 = vunpack.c.l.b16 %v723
    %v829 = vunpack.c.h.b16 %v723
    %v830 = vunpack.c.l.b16 %v724
    %v831 = vunpack.c.h.b16 %v724
    %v832 = vunpack.c.l.b16 %v725
    %v833 = vunpack.c.h.b16 %v725
    %v834 = vunpack.c.l.b16 %v726
    %v835 = vunpack.c.h.b16 %v726
    %v836 = vunpack.c.l.b16 %v727
    %v837 = vunpack.c.h.b16 %v727
    %v838 = vunpack.c.l.b16 %v728
    %v839 = vunpack.c.h.b16 %v728
    %v840 = vunpack.c.l.b16 %v729
    %v841 = vunpack.c.h.b16 %v729
    %v842 = vunpack.c.l.b16 %v730
    %v843 = vunpack.c.h.b16 %v730
    %v844 = vunpack.c.l.b16 %v731
    %v845 = vunpack.c.h.b16 %v731
    %v846 = vpack.c.b16 %v790, %v782
    %v847 = vpack.c.b16 %v791, %v783
    %v848 = vpack.c.b16 %v792, %v784
    %v849 = vpack.c.b16 %v793, %v785
    %v850 = vpack.c.b16 %v794, %v786
    %v851 = vpack.c.b16 %v795, %v787
    %v852 = vpack.c.b16 %v796, %v788
    %v853 = vpack.c.b16 %v797, %v789
    %v854 = vpack.c.b16 %v806, %v798
    %v855 = vpack.c.b16 %v807, %v799
    %v856 = vpack.c.b16 %v808, %v800
    %v857 = vpack.c.b16 %v809, %v801
    %v858 = vpack.c.b16 %v810, %v802
    %v859 = vpack.c.b16 %v811, %v803
    %v860 = vpack.c.b16 %v812, %v804
    %v861 = vpack.c.b16 %v813, %v805
    %v862 = vpack.c.b16 %v822, %v814
    %v863 = vpack.c.b16 %v823, %v815
    %v864 = vpack.c.b16 %v824, %v816
    %v865 = vpack.c.b16 %v825, %v817
    %v866 = vpack.c.b16 %v826, %v818
    %v867 = vpack.c.b16 %v827, %v819
    %v868 = vpack.c.b16 %v828, %v820
    %v869 = vpack.c.b16 %v829, %v821
    %v870 = vpack.c.b16 %v838, %v830
    %v871 = vpack.c.b16 %v839, %v831
    %v872 = vpack.c.b16 %v840, %v832
    %v873 = vpack.c.b16 %v841, %v833
    %v874 = vpack.c.b16 %v842, %v834
    %v875 = vpack.c.b16 %v843, %v835
    %v876 = vpack.c.b16 %v844, %v836
    %v877 = vpack.c.b16 %v845, %v837
    %v911 = vsel %vm405, %v699, 0
    %913 = vmatpush.bf16.msra.mxu0 0
    %914 = vmatpush.bf16.msra.mxu0 0
    %915 = vmatpush.bf16.msra.mxu0 0
    %916 = vmatpush.bf16.msra.mxu0 0
    %917 = vmatpush.bf16.msra.mxu0 %v870
    %918 = vmatpush.bf16.msra.mxu0 %v862
    %919 = vmatpush.bf16.msra.mxu0 %v854
    %920 = vmatpush.bf16.msra.mxu0 %v846
    %921 = vmatmul.bf16.gmra.mxu0 %v911
    %v922 = vpop.f32.mrf.mxu0
    %v923 = vadd.f32 %v734, %v922
    %v924 = vpop.f32.mrf.mxu0
    %925 = vdwg.mxu0
    %926 = vmatpush.bf16.msra.mxu0 0
    %927 = vmatpush.bf16.msra.mxu0 0
    %928 = vmatpush.bf16.msra.mxu0 0
    %929 = vmatpush.bf16.msra.mxu0 0
    %930 = vmatpush.bf16.msra.mxu0 %v871
    %931 = vmatpush.bf16.msra.mxu0 %v863
    %932 = vmatpush.bf16.msra.mxu0 %v855
    %933 = vmatpush.bf16.msra.mxu0 %v847
    %934 = vmatmul.bf16.gmra.mxu0 %v911
    %v935 = vpop.f32.mrf.mxu0
    %v936 = vadd.f32 %v735, %v935
    %v937 = vpop.f32.mrf.mxu0
    %938 = vdwg.mxu0
    %939 = vmatpush.bf16.msra.mxu0 0
    %940 = vmatpush.bf16.msra.mxu0 0
    %941 = vmatpush.bf16.msra.mxu0 0
    %942 = vmatpush.bf16.msra.mxu0 0
    %943 = vmatpush.bf16.msra.mxu0 %v872
    %944 = vmatpush.bf16.msra.mxu0 %v864
    %945 = vmatpush.bf16.msra.mxu0 %v856
    %946 = vmatpush.bf16.msra.mxu0 %v848
    %947 = vmatmul.bf16.gmra.mxu0 %v911
    %v948 = vpop.f32.mrf.mxu0
    %v949 = vadd.f32 %v736, %v948
    %v950 = vpop.f32.mrf.mxu0
    %951 = vdwg.mxu0
    %952 = vmatpush.bf16.msra.mxu0 0
    %953 = vmatpush.bf16.msra.mxu0 0
    %954 = vmatpush.bf16.msra.mxu0 0
    %955 = vmatpush.bf16.msra.mxu0 0
    %956 = vmatpush.bf16.msra.mxu0 %v873
    %957 = vmatpush.bf16.msra.mxu0 %v865
    %958 = vmatpush.bf16.msra.mxu0 %v857
    %959 = vmatpush.bf16.msra.mxu0 %v849
    %960 = vmatmul.bf16.gmra.mxu0 %v911
    %v961 = vpop.f32.mrf.mxu0
    %v962 = vadd.f32 %v737, %v961
    %v963 = vpop.f32.mrf.mxu0
    %964 = vdwg.mxu0
    %965 = vmatpush.bf16.msra.mxu0 0
    %966 = vmatpush.bf16.msra.mxu0 0
    %967 = vmatpush.bf16.msra.mxu0 0
    %968 = vmatpush.bf16.msra.mxu0 0
    %969 = vmatpush.bf16.msra.mxu0 %v874
    %970 = vmatpush.bf16.msra.mxu0 %v866
    %971 = vmatpush.bf16.msra.mxu0 %v858
    %972 = vmatpush.bf16.msra.mxu0 %v850
    %973 = vmatmul.bf16.gmra.mxu0 %v911
    %v974 = vpop.f32.mrf.mxu0
    %v975 = vadd.f32 %v738, %v974
    %v976 = vpop.f32.mrf.mxu0
    %977 = vdwg.mxu0
    %978 = vmatpush.bf16.msra.mxu0 0
    %979 = vmatpush.bf16.msra.mxu0 0
    %980 = vmatpush.bf16.msra.mxu0 0
    %981 = vmatpush.bf16.msra.mxu0 0
    %982 = vmatpush.bf16.msra.mxu0 %v875
    %983 = vmatpush.bf16.msra.mxu0 %v867
    %984 = vmatpush.bf16.msra.mxu0 %v859
    %985 = vmatpush.bf16.msra.mxu0 %v851
    %986 = vmatmul.bf16.gmra.mxu0 %v911
    %v987 = vpop.f32.mrf.mxu0
    %v988 = vadd.f32 %v739, %v987
    %v989 = vpop.f32.mrf.mxu0
    %990 = vdwg.mxu0
    %991 = vmatpush.bf16.msra.mxu0 0
    %992 = vmatpush.bf16.msra.mxu0 0
    %993 = vmatpush.bf16.msra.mxu0 0
    %994 = vmatpush.bf16.msra.mxu0 0
    %995 = vmatpush.bf16.msra.mxu0 %v876
    %996 = vmatpush.bf16.msra.mxu0 %v868
    %997 = vmatpush.bf16.msra.mxu0 %v860
    %998 = vmatpush.bf16.msra.mxu0 %v852
    %999 = vmatmul.bf16.gmra.mxu0 %v911
    %v1000 = vpop.f32.mrf.mxu0
    %v1001 = vadd.f32 %v740, %v1000
    %v1002 = vpop.f32.mrf.mxu0
    %1003 = vdwg.mxu0
    %1004 = vmatpush.bf16.msra.mxu0 0
    %1005 = vmatpush.bf16.msra.mxu0 0
    %1006 = vmatpush.bf16.msra.mxu0 0
    %1007 = vmatpush.bf16.msra.mxu0 0
    %1008 = vmatpush.bf16.msra.mxu0 %v877
    %1009 = vmatpush.bf16.msra.mxu0 %v869
    %1010 = vmatpush.bf16.msra.mxu0 %v861
    %1011 = vmatpush.bf16.msra.mxu0 %v853
    %1012 = vmatmul.bf16.gmra.mxu0 %v911
    %v1013 = vpop.f32.mrf.mxu0
    %v1014 = vadd.f32 %v741, %v1013
    %v1015 = vpop.f32.mrf.mxu0
    %1016 = vdwg.mxu0
    %v1025 = vrot.slane %v936, 6
    %v1026 = vrot.slane %v949, 4
    %v1027 = vrot.slane %v962, 2
    %v1028 = vrot.slane %v988, 6
    %v1029 = vrot.slane %v1001, 4
    %v1030 = vrot.slane %v1014, 2
    %vm1031 = vcmask 1041408
    %v1032 = vsel %vm1031, %v923, %v1025
    %vm1033 = vcmask 1045508
    %v1034 = vsel %vm1033, %v1026, %v1027
    %vm1035 = vcmask 1043456
    %v1036 = vsel %vm1035, %v1032, %v1034
    %v1037 = vsel %vm1031, %v975, %v1028
    %v1038 = vsel %vm1033, %v1029, %v1030
    %v1039 = vsel %vm1035, %v1037, %v1038
    %1042 = vst [vmem:[#allocation2] sm:$0xff] %v1036
    %1043 = vst [vmem:[#allocation2 + $0x8] sm:$0xff] %v1039
    // Predicated region
    $region58: #{tpu_custom_call.1} parent=1 // pred_check
      _
    $region59: #{tpu_custom_call.1} parent=1 // pred_check_branch
      %1045 = sbr.rel (0) target = $region61
    $region60: #{tpu_custom_call.1} parent=1 // pred_region
      %1047 = vsyncadd [#allocation3], 0
      %s1049 = sshll.u32 [#allocation2], 4
      %s1050 = int_to_ptr.vmem [resolvable:$true] %s1049
      %s1051 = sshll.u32 %s14, 4
      %s1052 = int_to_ptr.hbm [resolvable:$true] %s1051
      %1054 = dma.vmem_to_hbm [thread:$0]  %s1050, 256, %s1052, [#allocation3]
    $region61: #{tpu_custom_call.1} parent=1 // pred_fallthru
      _
    // Predicated region
    $region62: #{tpu_custom_call.1} parent=1 // pred_check
      _
    $region63: #{tpu_custom_call.1} parent=1 // pred_check_branch
      %1056 = sbr.rel (0) target = $region65
    $region64: #{tpu_custom_call.1} parent=1 // pred_region
      %1058 = vsyncadd [#allocation5], 0
      %s1060 = sshll.u32 [#allocation4], 4
      %s1061 = int_to_ptr.vmem [resolvable:$true] %s1060
      %s1062 = sshll.u32 %s15, 4
      %s1063 = int_to_ptr.hbm [resolvable:$true] %s1062
      %1065 = dma.vmem_to_hbm [thread:$0]  %s1061, 32, %s1063, [#allocation5]
    $region65: #{tpu_custom_call.1} parent=1 // pred_fallthru
      _
    // Predicated region
    $region66: #{tpu_custom_call.1} parent=1 // pred_check
      _
    $region67: #{tpu_custom_call.1} parent=1 // pred_check_branch
      %1067 = sbr.rel (0) target = $region69
    $region68: #{tpu_custom_call.1} parent=1 // pred_region
      %1069 = dma.done [#allocation3], 256
    $region69: #{tpu_custom_call.1} parent=1 // pred_fallthru
      _
    // Predicated region
    $region70: #{tpu_custom_call.1} parent=1 // pred_check
      _
    $region71: #{tpu_custom_call.1} parent=1 // pred_check_branch
      %1071 = sbr.rel (0) target = $region73
    $region72: #{tpu_custom_call.1} parent=1 // pred_region
      %1073 = dma.done [#allocation5], 32
    $region73: #{tpu_custom_call.1} parent=1 // pred_fallthru
      _
    %1074 = vsyncpa [#allocation3], 1
    %1075 = vsyncpa [#allocation5], 1

</llo_original>
